<compile_context>
chip_gen: v7x
topology: tpu7x:2x2x1
jax: 0.10.0
libtpu: 0.0.40
codegen_flags: <defaults>
</compile_context>

<pallas_src>
import jax
import jax.numpy as jnp
from jax.experimental import pallas as pl
from jax.experimental.pallas import tpu as pltpu


def _double_block_kernel(x_ref, w1_ref, t1_ref, w2_ref, t2_ref, o_ref):
    # x_ref : (TB, Cin, L)      input block, original NCL layout (no padding)
    # w1_ref: (Cout, 3*Cin)     conv1 weights, taps stacked [x[l-1] | x[l] | x[l+1]], BN1 scale folded
    # t1_ref: (Cout, 1)         BN1 shift (includes conv1 bias), f32
    # w2_ref: (Cout, 3*Cout)    conv2 weights, taps stacked, BN2 scale folded
    # t2_ref: (Cout, 1)         BN2 shift, f32
    # o_ref : (TB, Cout, L)     output block, NCL layout
    cdt = w1_ref.dtype
    tb = x_ref.shape[0]

    # Resident weights / shifts: load once per grid step, shared across the batch loop.
    w1 = w1_ref[...]
    t1 = t1_ref[...]
    w2 = w2_ref[...]
    t2 = t2_ref[...]

    def shifted(xb):
        # xb: (C, L).  Lane shifts with zero fill (Conv1d pad=1) via static slice+concat.
        zcol = jnp.zeros_like(xb[:, :1])
        x_lft = jnp.concatenate([zcol, xb[:, :-1]], axis=1)   # x[:, l-1], 0 at l=0
        x_rgt = jnp.concatenate([xb[:, 1:], zcol], axis=1)    # x[:, l+1], 0 at l=L-1
        return x_lft, x_rgt

    def conv3_bn_relu(xb, w, shift):
        # Single fused MXU contraction over K = 3*C (all taps at once), f32 accumulation.
        x_lft, x_rgt = shifted(xb)
        xs = jnp.concatenate([x_lft, xb, x_rgt], axis=0)              # (3C, L)
        z = jnp.dot(w, xs, preferred_element_type=jnp.float32)        # (Cout, L) f32
        return jnp.maximum(z + shift, 0.0)                            # folded BN shift + ReLU

    def body(b, carry):
        xb = x_ref[b].astype(cdt)                    # (Cin, L)
        h = conv3_bn_relu(xb, w1, t1)                # (Cout, L) f32
        y = conv3_bn_relu(h.astype(cdt), w2, t2)     # (Cout, L) f32
        o_ref[b] = y.astype(o_ref.dtype)
        return carry

    jax.lax.fori_loop(0, tb, body, 0)


def _fold_bn(gamma, beta, mean, var, conv_bias, eps=1e-5):
    scale = (gamma / jnp.sqrt(var + eps)).astype(jnp.float32)
    shift = (scale * (conv_bias - mean) + beta).astype(jnp.float32)
    return scale, shift


def _stack_taps(w, scale, compute_dtype):
    # w: (Cout, Cin_or_Cout, 3) PyTorch layout; tap k=0 hits x[l-1], k=1 x[l], k=2 x[l+1].
    # Fold BN scale (per output channel) and stack taps along the contraction axis:
    # result (Cout, 3*C) with column layout [tap0 over C | tap1 over C | tap2 over C].
    cout, c, _ = w.shape
    wf = w.astype(jnp.float32) * scale[:, None, None]
    return jnp.transpose(wf, (0, 2, 1)).reshape(cout, 3 * c).astype(compute_dtype)


def _choose_batch_tile(n, cin, cout, l, itemsize, max_tb, budget_bytes):
    # Double-buffered in+out block footprint per sample.
    per_sample = 2 * l * (cin + cout) * itemsize
    tb = max(1, min(max_tb, int(budget_bytes // max(per_sample, 1))))
    if n >= 2:
        tb = min(tb, pl.cdiv(n, 2))  # keep >= 2 grid steps: feeds both TCs on v7x
    return max(1, min(tb, n))


def in_conv_pallas(x_ncl, params, *, compute_dtype=jnp.bfloat16, max_batch_block=8,
                   block_budget_bytes=24 * 1024 * 1024):
    """x_ncl: (N, Cin, L); returns (N, Cout, L) — same layout/dtype as the PyTorch module."""
    N, Cin, L = x_ncl.shape
    Cout = params["w2"].shape[0]
    in_item = x_ncl.dtype.itemsize
    w_item = jnp.dtype(compute_dtype).itemsize

    s1, t1 = _fold_bn(params["g1"], params["be1"], params["m1"], params["v1"], params["b1"])
    s2, t2 = _fold_bn(params["g2"], params["be2"], params["m2"], params["v2"], params["b2"])

    w1 = _stack_taps(params["w1"], s1, compute_dtype)     # (Cout, 3*Cin)
    w2 = _stack_taps(params["w2"], s2, compute_dtype)     # (Cout, 3*Cout)
    t1 = t1.reshape(Cout, 1)
    t2 = t2.reshape(Cout, 1)

    TB = _choose_batch_tile(N, Cin, Cout, L, in_item, max_batch_block, block_budget_bytes)
    n_blocks = pl.cdiv(N, TB)
    n_pad = n_blocks * TB
    x_in = x_ncl if n_pad == N else jnp.pad(x_ncl, ((0, n_pad - N), (0, 0), (0, 0)))

    # Explicit scoped-VMEM limit: double-buffered I/O blocks + resident weights + per-sample
    # f32 temporaries, with ~30% headroom; capped at v7x's 64 MiB physical VMEM.
    io_bytes = 2 * TB * L * (Cin + Cout) * in_item
    w_bytes = 2 * ((3 * Cin + 3 * Cout) * Cout * w_item + 2 * Cout * 4)
    tmp_bytes = 16 * max(Cin, Cout) * max(L, 128) * 4
    vmem_limit = int(1.3 * (io_bytes + w_bytes + tmp_bytes))
    vmem_limit = max(4 * 1024 * 1024, min(vmem_limit, 64 * 1024 * 1024))

    out = pl.pallas_call(
        _double_block_kernel,
        out_shape=jax.ShapeDtypeStruct((n_pad, Cout, L), x_ncl.dtype),
        grid_spec=pltpu.PrefetchScalarGridSpec(
            num_scalar_prefetch=0,
            grid=(n_blocks,),
            in_specs=[
                pl.BlockSpec((TB, Cin, L), lambda n: (n, 0, 0)),
                pl.BlockSpec((Cout, 3 * Cin), lambda n: (0, 0)),
                pl.BlockSpec((Cout, 1), lambda n: (0, 0)),
                pl.BlockSpec((Cout, 3 * Cout), lambda n: (0, 0)),
                pl.BlockSpec((Cout, 1), lambda n: (0, 0)),
            ],
            out_specs=pl.BlockSpec((TB, Cout, L), lambda n: (n, 0, 0)),
        ),
        compiler_params=pltpu.CompilerParams(
            dimension_semantics=("parallel",),
            vmem_limit_bytes=vmem_limit,
        ),
    )(x_in, w1, t1, w2, t2)
    return out if n_pad == N else out[:N]


# ----------------- pure-JAX reference (for verification) -----------------
def _ref_conv1d(x, w, b):
    # x: (N, C, L), w: (Cout, Cin, 3), pad=1
    y = jax.lax.conv_general_dilated(
        x, w, window_strides=(1,), padding=((1, 1),),
        dimension_numbers=("NCH", "OIH", "NCH"))
    return y + b[None, :, None]


def _ref_bn_relu(x, gamma, beta, mean, var, eps=1e-5):
    y = (x - mean[None, :, None]) / jnp.sqrt(var[None, :, None] + eps)
    y = y * gamma[None, :, None] + beta[None, :, None]
    return jnp.maximum(y, 0.0)


def in_conv_ref(x, p):
    h = _ref_bn_relu(_ref_conv1d(x, p["w1"], p["b1"]), p["g1"], p["be1"], p["m1"], p["v1"])
    return _ref_bn_relu(_ref_conv1d(h, p["w2"], p["b2"]), p["g2"], p["be2"], p["m2"], p["v2"])


if __name__ == "__main__":
    N, Cin, Cout, L = 2, 4, 8, 16
    ks = jax.random.split(jax.random.PRNGKey(0), 13)
    params = {
        "w1": 0.1 * jax.random.normal(ks[0], (Cout, Cin, 3), jnp.float32),
        "b1": 0.1 * jax.random.normal(ks[1], (Cout,), jnp.float32),
        "g1": 1.0 + 0.1 * jax.random.normal(ks[2], (Cout,), jnp.float32),
        "be1": 0.1 * jax.random.normal(ks[3], (Cout,), jnp.float32),
        "m1": 0.1 * jax.random.normal(ks[4], (Cout,), jnp.float32),
        "v1": 0.5 + jax.random.uniform(ks[5], (Cout,), jnp.float32),
        "w2": 0.1 * jax.random.normal(ks[6], (Cout, Cout, 3), jnp.float32),
        "b2": 0.1 * jax.random.normal(ks[7], (Cout,), jnp.float32),
        "g2": 1.0 + 0.1 * jax.random.normal(ks[8], (Cout,), jnp.float32),
        "be2": 0.1 * jax.random.normal(ks[9], (Cout,), jnp.float32),
        "m2": 0.1 * jax.random.normal(ks[10], (Cout,), jnp.float32),
        "v2": 0.5 + jax.random.uniform(ks[11], (Cout,), jnp.float32),
    }
    x = jax.random.normal(ks[12], (N, Cin, L), jnp.float32)

    ref = jax.block_until_ready(in_conv_ref(x, params))

    # Exact-math path (f32 weights/activations): tight tolerance.
    out_f32 = jax.block_until_ready(in_conv_pallas(x, params, compute_dtype=jnp.float32))
    assert out_f32.shape == (N, Cout, L), out_f32.shape
    assert jnp.allclose(out_f32, ref, atol=1e-4, rtol=1e-4), \
        float(jnp.max(jnp.abs(out_f32 - ref)))

    # Default fast path (bf16 weights/activations, f32 accumulation): looser tolerance.
    out_bf16 = jax.block_until_ready(in_conv_pallas(x, params))
    assert out_bf16.shape == (N, Cout, L), out_bf16.shape
    assert jnp.allclose(out_bf16, ref, atol=5e-2, rtol=5e-2), \
        float(jnp.max(jnp.abs(out_bf16 - ref)))

    print("KERNEL_OK")
</pallas_src>

<mosaic_0001>
module attributes {stable_mosaic.version = 11 : i64} {
  func.func @_double_block_kernel(%arg0: i32, %arg1: memref<1x4x16xf32, #tpu.memory_space<vmem>>, %arg2: memref<8x12xf32, #tpu.memory_space<vmem>>, %arg3: memref<8x1xf32, #tpu.memory_space<vmem>>, %arg4: memref<8x24xf32, #tpu.memory_space<vmem>>, %arg5: memref<8x1xf32, #tpu.memory_space<vmem>>, %arg6: memref<1x8x16xf32, #tpu.memory_space<vmem>>) attributes {dimension_semantics = [#tpu.dimension_semantics<parallel>], iteration_bounds = array<i64: 2>, scalar_prefetch = 0 : i64, scratch_operands = 0 : i64, tpu.core_type = #tpu.core_type<tc>, window_params = [{transform_indices = @transform_0, window_bounds = array<i64: 1, 4, 16>}, {pipeline_mode = #tpu.pipeline_mode<synchronous>, transform_indices = @transform_1, window_bounds = array<i64: 8, 12>}, {pipeline_mode = #tpu.pipeline_mode<synchronous>, transform_indices = @transform_2, window_bounds = array<i64: 8, 1>}, {pipeline_mode = #tpu.pipeline_mode<synchronous>, transform_indices = @transform_3, window_bounds = array<i64: 8, 24>}, {pipeline_mode = #tpu.pipeline_mode<synchronous>, transform_indices = @transform_4, window_bounds = array<i64: 8, 1>}, {transform_indices = @transform_5, window_bounds = array<i64: 1, 8, 16>}]} {
    %c0 = arith.constant 0 : index
    %c0_0 = arith.constant 0 : index
    %0 = vector.load %arg2[%c0, %c0_0] : memref<8x12xf32, #tpu.memory_space<vmem>>, vector<8x12xf32>
    %c0_1 = arith.constant 0 : index
    %c0_2 = arith.constant 0 : index
    %1 = vector.load %arg3[%c0_1, %c0_2] : memref<8x1xf32, #tpu.memory_space<vmem>>, vector<8x1xf32>
    %c0_3 = arith.constant 0 : index
    %c0_4 = arith.constant 0 : index
    %2 = vector.load %arg4[%c0_3, %c0_4] : memref<8x24xf32, #tpu.memory_space<vmem>>, vector<8x24xf32>
    %c0_5 = arith.constant 0 : index
    %c0_6 = arith.constant 0 : index
    %3 = vector.load %arg5[%c0_5, %c0_6] : memref<8x1xf32, #tpu.memory_space<vmem>>, vector<8x1xf32>
    %c0_i32 = arith.constant 0 : i32
    %4 = arith.index_cast %c0_i32 : i32 to index
    %c0_7 = arith.constant 0 : index
    %c0_8 = arith.constant 0 : index
    %5 = vector.load %arg1[%4, %c0_7, %c0_8] : memref<1x4x16xf32, #tpu.memory_space<vmem>>, vector<1x4x16xf32>
    %6 = vector.shape_cast %5 : vector<1x4x16xf32> to vector<4x16xf32>
    %cst = arith.constant 0.000000e+00 : f32
    %7 = vector.broadcast %cst : f32 to vector<4x1xf32>
    %8 = vector.extract_strided_slice %6 {offsets = [0, 0], sizes = [4, 15], strides = [1, 1]} : vector<4x16xf32> to vector<4x15xf32>
    %9 = tpu.concatenate %7, %8 in 1 : vector<4x1xf32>, vector<4x15xf32> -> vector<4x16xf32>
    %10 = vector.extract_strided_slice %6 {offsets = [0, 1], sizes = [4, 15], strides = [1, 1]} : vector<4x16xf32> to vector<4x15xf32>
    %11 = tpu.concatenate %10, %7 in 1 : vector<4x15xf32>, vector<4x1xf32> -> vector<4x16xf32>
    %12 = tpu.concatenate %9, %6, %11 in 0 : vector<4x16xf32>, vector<4x16xf32>, vector<4x16xf32> -> vector<12x16xf32>
    %cst_9 = arith.constant dense<0.000000e+00> : vector<8x16xf32>
    %13 = tpu.matmul %0, %12, %cst_9 {dimension_numbers = #tpu.dot_dimension_numbers<[1], [0], [0], [1], [0, 0, 1, 1], [], []>} : vector<8x12xf32>, vector<12x16xf32>, vector<8x16xf32> -> vector<8x16xf32>
    %14 = vector.broadcast %1 : vector<8x1xf32> to vector<8x16xf32>
    %15 = arith.addf %13, %14 : vector<8x16xf32>
    %cst_10 = arith.constant 0.000000e+00 : f32
    %16 = vector.broadcast %cst_10 : f32 to vector<8x16xf32>
    %17 = arith.maximumf %15, %16 : vector<8x16xf32>
    %cst_11 = arith.constant 0.000000e+00 : f32
    %18 = vector.broadcast %cst_11 : f32 to vector<8x1xf32>
    %19 = vector.extract_strided_slice %17 {offsets = [0, 0], sizes = [8, 15], strides = [1, 1]} : vector<8x16xf32> to vector<8x15xf32>
    %20 = tpu.concatenate %18, %19 in 1 : vector<8x1xf32>, vector<8x15xf32> -> vector<8x16xf32>
    %21 = vector.extract_strided_slice %17 {offsets = [0, 1], sizes = [8, 15], strides = [1, 1]} : vector<8x16xf32> to vector<8x15xf32>
    %22 = tpu.concatenate %21, %18 in 1 : vector<8x15xf32>, vector<8x1xf32> -> vector<8x16xf32>
    %23 = tpu.concatenate %20, %17, %22 in 0 : vector<8x16xf32>, vector<8x16xf32>, vector<8x16xf32> -> vector<24x16xf32>
    %cst_12 = arith.constant dense<0.000000e+00> : vector<8x16xf32>
    %24 = tpu.matmul %2, %23, %cst_12 {dimension_numbers = #tpu.dot_dimension_numbers<[1], [0], [0], [1], [0, 0, 1, 1], [], []>} : vector<8x24xf32>, vector<24x16xf32>, vector<8x16xf32> -> vector<8x16xf32>
    %25 = vector.broadcast %3 : vector<8x1xf32> to vector<8x16xf32>
    %26 = arith.addf %24, %25 : vector<8x16xf32>
    %cst_13 = arith.constant 0.000000e+00 : f32
    %27 = vector.broadcast %cst_13 : f32 to vector<8x16xf32>
    %28 = arith.maximumf %26, %27 : vector<8x16xf32>
    %29 = arith.index_cast %c0_i32 : i32 to index
    %c0_14 = arith.constant 0 : index
    %c0_15 = arith.constant 0 : index
    %30 = vector.load %arg6[%29, %c0_14, %c0_15] : memref<1x8x16xf32, #tpu.memory_space<vmem>>, vector<1x8x16xf32>
    %31 = vector.shape_cast %30 : vector<1x8x16xf32> to vector<8x16xf32>
    %32 = vector.shape_cast %28 : vector<8x16xf32> to vector<1x8x16xf32>
    tpu.vector_store %arg6[%29, %c0_14, %c0_15], %32 {strides = array<i32>} : memref<1x8x16xf32, #tpu.memory_space<vmem>>, vector<1x8x16xf32>,
    %c1_i32 = arith.constant 1 : i32
    return
  }
  func.func @transform_0(%arg0: i32) -> (i32, i32, i32) {
    %c0_i32 = arith.constant 0 : i32
    %c0_i32_0 = arith.constant 0 : i32
    %c0_i32_1 = arith.constant 0 : i32
    return %arg0, %c0_i32, %c0_i32_0 : i32, i32, i32
  }
  func.func @transform_1(%arg0: i32) -> (i32, i32) {
    %c0_i32 = arith.constant 0 : i32
    %c0_i32_0 = arith.constant 0 : i32
    %c0_i32_1 = arith.constant 0 : i32
    return %c0_i32, %c0_i32_0 : i32, i32
  }
  func.func @transform_2(%arg0: i32) -> (i32, i32) {
    %c0_i32 = arith.constant 0 : i32
    %c0_i32_0 = arith.constant 0 : i32
    %c0_i32_1 = arith.constant 0 : i32
    return %c0_i32, %c0_i32_0 : i32, i32
  }
  func.func @transform_3(%arg0: i32) -> (i32, i32) {
    %c0_i32 = arith.constant 0 : i32
    %c0_i32_0 = arith.constant 0 : i32
    %c0_i32_1 = arith.constant 0 : i32
    return %c0_i32, %c0_i32_0 : i32, i32
  }
  func.func @transform_4(%arg0: i32) -> (i32, i32) {
    %c0_i32 = arith.constant 0 : i32
    %c0_i32_0 = arith.constant 0 : i32
    %c0_i32_1 = arith.constant 0 : i32
    return %c0_i32, %c0_i32_0 : i32, i32
  }
  func.func @transform_5(%arg0: i32) -> (i32, i32, i32) {
    %c0_i32 = arith.constant 0 : i32
    %c0_i32_0 = arith.constant 0 : i32
    %c0_i32_1 = arith.constant 0 : i32
    return %arg0, %c0_i32, %c0_i32_0 : i32, i32, i32
  }
}

</mosaic_0001>

<llo_original>
// kernel: tpu_custom_call.1
$region0: #{tpu_custom_call.1}
  #allocation0 [shape = 'u32[]', space=smem, size = 0x4, offset = 0x4, fixed_abs, tag = 'smem constant byte address 0x4 - core index']
  #allocation1 [shape = 'u32[144,128]{1,0:T(1,128)}', space=vmem, size = 0x12000, scoped, tag = 'internal scratch']
  %s0 = inlined_call_operand.vmem [shape: f32[2,4,16], index: 0, kind: input, shape index: {}]
  %s1 = inlined_call_operand.vmem [shape: f32[8,12], index: 1, kind: input, shape index: {}]
  %s2 = inlined_call_operand.vmem [shape: f32[8,1], index: 2, kind: input, shape index: {}]
  %s3 = inlined_call_operand.vmem [shape: f32[8,24], index: 3, kind: input, shape index: {}]
  %s4 = inlined_call_operand.vmem [shape: f32[8,1], index: 4, kind: input, shape index: {}]
  %s5 = inlined_call_operand.hbm [shape: f32[2,8,16], index: 5, kind: output, shape index: {}]
  %s6 = sld [smem:[#allocation0]]
  $region53: #{tpu_custom_call.1} parent=0
    _
  %s8 = ssub.s32 1, %s6
  %s9 = scalar_select 0, %s8, %s6
  $region1: #{tpu_custom_call.1} parent=0
    #allocation2 [shape = 'u8[8192]{0}', space=vmem, size = 0x2000, scoped, tag = 'output window, operand 0']
    #allocation3 [shape = 's32[2]{0}', space=sflag, size = 0x8, scoped, tag = 'scoped memory for tpu_custom_call.1']
    %10 = vsyncpa [#allocation3], 0
    %s11 = scalar_lea.sflag [#allocation3], 1
    %12 = vsyncpa %s11, 0
    loop: start=0, step=1, limit=4
    $region2: #{tpu_custom_call.1} parent=1 // loop_pre_header
      _
    $region3: #{tpu_custom_call.1} parent=1 // loop_header
      %s14 = sphi 0, %s18
      %p15 = scmp.ge.s32.totalorder %s14, 4
      %s24 = sphi 0, %s26
      %s27 = sphi 0, %s24
      %s28 = sphi 0, %s27
      %s44 = sphi 0, %s28
      %s48 = sphi 0, %s48
      %s50 = sphi 0, %s48
      %s51 = sphi 0, %s50
      %s65 = sphi 0, %s51
      %s69 = sphi 0, %s69
      %s71 = sphi 0, %s69
      %s72 = sphi 0, %s71
      %s86 = sphi 0, %s72
      %s90 = sphi 0, %s90
      %s92 = sphi 0, %s90
      %s93 = sphi 0, %s92
      %s107 = sphi 0, %s93
      %s111 = sphi 0, %s111
      %s113 = sphi 0, %s111
      %s114 = sphi 0, %s113
      %s128 = sphi 0, %s114
      %s134 = sphi 0, %s136
      %s137 = sphi 0, %s134
      %s138 = sphi 0, %s137
      %s154 = sphi 0, %s138
    $region4: #{tpu_custom_call.1} parent=1 // loop_header_branch
      %17 = sbr.rel (%p15) target = $region8
    $region5: #{tpu_custom_call.1} parent=1 // loop_body
      %s19 = ssub.s32 %s14, 1
      %s20 = ssub.s32 %s14, 2
      %s21 = sadd.s32 %s14, 1
      %s22 = ssub.s32 %s14, %s21
      %p23 = scmp.eq.s32.totalorder %s22, 0
      %s25 = sadd.s32 %s24, 1
      %s26 = scalar_select %p23, %s24, %s25
      %p29 = pneg %p23
      %p30 = scmp.eq.s32.totalorder %s14, 1
      %p31 = por %p29, %p30
      %p32 = scmp.ne.s32.totalorder %s24, %s27
      %p33 = scmp.eq.s32.totalorder %s14, 0
      %p34 = por %p32, %p33
      %p35 = scmp.ne.s32.totalorder %s24, %s27
      %p36 = scmp.eq.s32.totalorder %s19, 1
      %p37 = por %p35, %p36
      %p38 = scmp.ne.s32.totalorder %s27, %s28
      %p39 = scmp.eq.s32.totalorder %s19, 0
      %p40 = por %p38, %p39
      %p41 = scmp.ne.s32.totalorder %s27, %s28
      %p42 = scmp.eq.s32.totalorder %s20, 1
      %p43 = por %p41, %p42
      %p45 = scmp.ne.s32.totalorder %s28, %s44
      %p46 = scmp.eq.s32.totalorder %s20, 0
      %p47 = por %p45, %p46
      %s49 = sadd.s32 %s48, 1
      %p52 = scmp.eq.s32.totalorder %s14, 1
      %p53 = scmp.ne.s32.totalorder %s48, %s50
      %p54 = scmp.eq.s32.totalorder %s14, 0
      %p55 = por %p53, %p54
      %p56 = scmp.ne.s32.totalorder %s48, %s50
      %p57 = scmp.eq.s32.totalorder %s19, 1
      %p58 = por %p56, %p57
      %p59 = scmp.ne.s32.totalorder %s50, %s51
      %p60 = scmp.eq.s32.totalorder %s19, 0
      %p61 = por %p59, %p60
      %p62 = scmp.ne.s32.totalorder %s50, %s51
      %p63 = scmp.eq.s32.totalorder %s20, 1
      %p64 = por %p62, %p63
      %p66 = scmp.ne.s32.totalorder %s51, %s65
      %p67 = scmp.eq.s32.totalorder %s20, 0
      %p68 = por %p66, %p67
      %s70 = sadd.s32 %s69, 1
      %p73 = scmp.eq.s32.totalorder %s14, 1
      %p74 = scmp.ne.s32.totalorder %s69, %s71
      %p75 = scmp.eq.s32.totalorder %s14, 0
      %p76 = por %p74, %p75
      %p77 = scmp.ne.s32.totalorder %s69, %s71
      %p78 = scmp.eq.s32.totalorder %s19, 1
      %p79 = por %p77, %p78
      %p80 = scmp.ne.s32.totalorder %s71, %s72
      %p81 = scmp.eq.s32.totalorder %s19, 0
      %p82 = por %p80, %p81
      %p83 = scmp.ne.s32.totalorder %s71, %s72
      %p84 = scmp.eq.s32.totalorder %s20, 1
      %p85 = por %p83, %p84
      %p87 = scmp.ne.s32.totalorder %s72, %s86
      %p88 = scmp.eq.s32.totalorder %s20, 0
      %p89 = por %p87, %p88
      %s91 = sadd.s32 %s90, 1
      %p94 = scmp.eq.s32.totalorder %s14, 1
      %p95 = scmp.ne.s32.totalorder %s90, %s92
      %p96 = scmp.eq.s32.totalorder %s14, 0
      %p97 = por %p95, %p96
      %p98 = scmp.ne.s32.totalorder %s90, %s92
      %p99 = scmp.eq.s32.totalorder %s19, 1
      %p100 = por %p98, %p99
      %p101 = scmp.ne.s32.totalorder %s92, %s93
      %p102 = scmp.eq.s32.totalorder %s19, 0
      %p103 = por %p101, %p102
      %p104 = scmp.ne.s32.totalorder %s92, %s93
      %p105 = scmp.eq.s32.totalorder %s20, 1
      %p106 = por %p104, %p105
      %p108 = scmp.ne.s32.totalorder %s93, %s107
      %p109 = scmp.eq.s32.totalorder %s20, 0
      %p110 = por %p108, %p109
      %s112 = sadd.s32 %s111, 1
      %p115 = scmp.eq.s32.totalorder %s14, 1
      %p116 = scmp.ne.s32.totalorder %s111, %s113
      %p117 = scmp.eq.s32.totalorder %s14, 0
      %p118 = por %p116, %p117
      %p119 = scmp.ne.s32.totalorder %s111, %s113
      %p120 = scmp.eq.s32.totalorder %s19, 1
      %p121 = por %p119, %p120
      %p122 = scmp.ne.s32.totalorder %s113, %s114
      %p123 = scmp.eq.s32.totalorder %s19, 0
      %p124 = por %p122, %p123
      %p125 = scmp.ne.s32.totalorder %s113, %s114
      %p126 = scmp.eq.s32.totalorder %s20, 1
      %p127 = por %p125, %p126
      %p129 = scmp.ne.s32.totalorder %s114, %s128
      %p130 = scmp.eq.s32.totalorder %s20, 0
      %p131 = por %p129, %p130
      %s132 = ssub.s32 %s14, %s21
      %p133 = scmp.eq.s32.totalorder %s132, 0
      %s135 = sadd.s32 %s134, 1
      %s136 = scalar_select %p133, %s134, %s135
      %p139 = pneg %p133
      %p140 = scmp.eq.s32.totalorder %s14, 1
      %p141 = por %p139, %p140
      %p142 = scmp.ne.s32.totalorder %s134, %s137
      %p143 = scmp.eq.s32.totalorder %s14, 0
      %p144 = por %p142, %p143
      %p145 = scmp.ne.s32.totalorder %s134, %s137
      %p146 = scmp.eq.s32.totalorder %s19, 1
      %p147 = por %p145, %p146
      %p148 = scmp.ne.s32.totalorder %s137, %s138
      %p149 = scmp.eq.s32.totalorder %s19, 0
      %p150 = por %p148, %p149
      %p151 = scmp.ne.s32.totalorder %s137, %s138
      %p152 = scmp.eq.s32.totalorder %s20, 1
      %p153 = por %p151, %p152
      %p155 = scmp.ne.s32.totalorder %s138, %s154
      %p156 = scmp.eq.s32.totalorder %s20, 0
      %p157 = por %p155, %p156
      %p158 = scmp.le.s32.totalorder 1, %s14
      %p159 = scmp.lt.s32.totalorder %s14, 3
      %p160 = pnand %p158, %p159
      %p161 = pneg %p160
      // Predicated region
      $region9: #{tpu_custom_call.1} parent=5 // pred_check
        _
      $region10: #{tpu_custom_call.1} parent=5 // pred_check_branch
        %163 = sbr.rel (%p160) target = $region12
      $region11: #{tpu_custom_call.1} parent=5 // pred_region
        %s164 = ssub.s32 %s14, 1
        // Predicated region
        $region13: #{tpu_custom_call.1} parent=11 // pred_check
          %p165 = pneg %p61
        $region14: #{tpu_custom_call.1} parent=11 // pred_check_branch
          %167 = sbr.rel (%p165) target = $region16
        $region15: #{tpu_custom_call.1} parent=11 // pred_region
          _
        $region16: #{tpu_custom_call.1} parent=11 // pred_fallthru
          _
        // Predicated region
        $region17: #{tpu_custom_call.1} parent=11 // pred_check
          %p168 = pneg %p82
        $region18: #{tpu_custom_call.1} parent=11 // pred_check_branch
          %170 = sbr.rel (%p168) target = $region20
        $region19: #{tpu_custom_call.1} parent=11 // pred_region
          _
        $region20: #{tpu_custom_call.1} parent=11 // pred_fallthru
          _
        // Predicated region
        $region21: #{tpu_custom_call.1} parent=11 // pred_check
          %p171 = pneg %p103
        $region22: #{tpu_custom_call.1} parent=11 // pred_check_branch
          %173 = sbr.rel (%p171) target = $region24
        $region23: #{tpu_custom_call.1} parent=11 // pred_region
          _
        $region24: #{tpu_custom_call.1} parent=11 // pred_fallthru
          _
        // Predicated region
        $region25: #{tpu_custom_call.1} parent=11 // pred_check
          %p174 = pneg %p124
        $region26: #{tpu_custom_call.1} parent=11 // pred_check_branch
          %176 = sbr.rel (%p174) target = $region28
        $region27: #{tpu_custom_call.1} parent=11 // pred_region
          _
        $region28: #{tpu_custom_call.1} parent=11 // pred_fallthru
          _
      $region12: #{tpu_custom_call.1} parent=5 // pred_fallthru
        _
      %p177 = scmp.lt.s32.totalorder %s14, 2
      // Predicated region
      $region29: #{tpu_custom_call.1} parent=5 // pred_check
        %p178 = pneg %p177
      $region30: #{tpu_custom_call.1} parent=5 // pred_check_branch
        %180 = sbr.rel (%p178) target = $region32
      $region31: #{tpu_custom_call.1} parent=5 // pred_region
        // Predicated region
        $region33: #{tpu_custom_call.1} parent=31 // pred_check
          %p181 = pneg %p34
        $region34: #{tpu_custom_call.1} parent=31 // pred_check_branch
          %183 = sbr.rel (%p181) target = $region36
        $region35: #{tpu_custom_call.1} parent=31 // pred_region
          %p184 = scmp.lt.s32.totalorder %s14, 1
          %s185 = scalar_select %p184, %s14, 1
          %s186 = smul.addr %s185, 4
          %s187 = scalar_lea.vmem %s0, %s186
        $region36: #{tpu_custom_call.1} parent=31 // pred_fallthru
          _
      $region32: #{tpu_custom_call.1} parent=5 // pred_fallthru
        _
      %p188 = scmp.le.s32.totalorder 1, %s14
      %p189 = scmp.lt.s32.totalorder %s14, 3
      %p190 = pnand %p188, %p189
      %p191 = pneg %p190
      // Predicated region
      $region37: #{tpu_custom_call.1} parent=5 // pred_check
        _
      $region38: #{tpu_custom_call.1} parent=5 // pred_check_branch
        %193 = sbr.rel (%p190) target = $region40
      $region39: #{tpu_custom_call.1} parent=5 // pred_region
        %s194 = ssub.s32 %s14, 1
        %p195 = scmp.lt.s32.totalorder %s19, 1
        %s196 = scalar_select %p195, %s19, 1
        %s197 = smul.addr %s196, 4
        %s198 = scalar_lea.vmem %s0, %s197
        %p199 = pneg %p40
        %p200 = pneg %p37
        %p201 = pneg %p61
        %p202 = pneg %p58
        %p203 = pneg %p82
        %p204 = pneg %p79
        %p205 = pneg %p103
        %p206 = pneg %p100
        %p207 = pneg %p124
        %p208 = pneg %p121
        %p209 = pneg %p150
        %p210 = pneg %p147
        %s211 = sand.u32 %s137, 1
        %s212 = scalar_lea.sflag [#allocation3], %s211
        %s213 = sand.u32 %s137, 1
        %s214 = smul.addr %s213, 8
        %s215 = scalar_lea.vmem [#allocation2], %s214
        %p216 = scmp.lt.s32.totalorder %s19, 1
        %s217 = scalar_select %p216, %s19, 1
        %s218 = smul.addr %s217, 4
        %s219 = scalar_lea.vmem %s0, %s218
        %v220 = vld [vmem:[%s1] sm:$0xff]
        %v221 = vld [vmem:[%s2] sm:$0xff]
        %v222 = vld [vmem:[%s3] sm:$0xff]
        %v223 = vld [vmem:[%s4] sm:$0xff]
        %v224 = vld [vmem:[%s219] sm:$0xf]
        %226 = vrot.lane.b32.xlu0 %v224, 1
        %v227 = vpop.permute.xlu0 %226
        %vm229 = vcmask 7168
        %v230 = vsel %vm229, 0.0, %v227
        %231 = vrot.lane.b32.xlu0 %v224, 127
        %v232 = vpop.permute.xlu0 %231
        %vm234 = vcmask 121856
        %v235 = vsel %vm234, %v232, 0.0
        %v236 = vrot.slane %v224, 4
        %vm238 = vcmask 1043456
        %v239 = vsel %vm238, %v230, %v236
        %241 = vset.pattern.permute.xlu0 0
        %242 = vperm.xlu0 %241, %v221
        %v243 = vpop.permute.xlu0 %242
        %vm245 = vcmask 97280
        %v247 = vsel %vm245, %v220, 0
        %v250 = vsel %vm238, %v235, 0
        %252 = vmatprep.subr.mxu0 0.0
        %253 = vmatpush1.msra.mxu0 %v239
        %254 = vmatprep.subr.mxu0 0.0
        %255 = vmatpush1.msra.mxu0 %v250
        %256 = vmatprep.subr.mxu0 0.0
        %257 = vmatpush1.msra.mxu0 0.0
        %258 = vmatprep.subr.mxu0 0.0
        %259 = vmatpush1.msra.mxu0 0.0
        %260 = vmatprep.subr.mxu0 0.0
        %261 = vmatpush1.msra.mxu0 0.0
        %262 = vmatprep.subr.mxu0 0.0
        %263 = vmatpush1.msra.mxu0 0.0
        %264 = vmatprep.subr.mxu0 0.0
        %265 = vmatpush1.msra.mxu0 0.0
        %266 = vmatprep.subr.mxu0 0.0
        %267 = vmatpush1.msra.mxu0 0.0
        %268 = vmatprep.subr.mxu0 0.0
        %269 = vmatpush1.msra.mxu0 0.0
        %270 = vmatprep.subr.mxu0 0.0
        %271 = vmatpush1.msra.mxu0 0.0
        %272 = vmatprep.subr.mxu0 0.0
        %273 = vmatpush1.msra.mxu0 0.0
        %274 = vmatprep.subr.mxu0 0.0
        %275 = vmatpush1.msra.mxu0 0.0
        %276 = vmatprep.subr.mxu0 0.0
        %277 = vmatpush1.msra.mxu0 0.0
        %278 = vmatprep.subr.mxu0 0.0
        %279 = vmatpush1.msra.mxu0 0.0
        %280 = vmatprep.subr.mxu0 0.0
        %281 = vmatpush1.msra.mxu0 0.0
        %282 = vmatprep.subr.mxu0 0.0
        %283 = vmatpush1.msra.mxu0 0.0
        %284 = vmatprep.subr.mxu0 0.0
        %285 = vmatpush1.msra.mxu0 0.0
        %286 = vmatprep.subr.mxu0 0.0
        %287 = vmatpush1.msra.mxu0 0.0
        %288 = vmatprep.subr.mxu0 0.0
        %289 = vmatpush1.msra.mxu0 0.0
        %290 = vmatprep.subr.mxu0 0.0
        %291 = vmatpush1.msra.mxu0 0.0
        %292 = vmatprep.subr.mxu0 0.0
        %293 = vmatpush1.msra.mxu0 0.0
        %294 = vmatprep.subr.mxu0 0.0
        %295 = vmatpush1.msra.mxu0 0.0
        %296 = vmatprep.subr.mxu0 0.0
        %297 = vmatpush1.msra.mxu0 0.0
        %298 = vmatprep.subr.mxu0 0.0
        %299 = vmatpush1.msra.mxu0 0.0
        %300 = vmatprep.subr.mxu0 0.0
        %301 = vmatpush1.msra.mxu0 0.0
        %302 = vmatprep.subr.mxu0 0.0
        %303 = vmatpush1.msra.mxu0 0.0
        %304 = vmatprep.subr.mxu0 0.0
        %305 = vmatpush1.msra.mxu0 0.0
        %306 = vmatprep.subr.mxu0 0.0
        %307 = vmatpush1.msra.mxu0 0.0
        %308 = vmatprep.subr.mxu0 0.0
        %309 = vmatpush1.msra.mxu0 0.0
        %310 = vmatprep.subr.mxu0 0.0
        %311 = vmatpush1.msra.mxu0 0.0
        %312 = vmatprep.subr.mxu0 0.0
        %313 = vmatpush1.msra.mxu0 0.0
        %314 = vmatprep.subr.mxu0 0.0
        %315 = vmatpush1.msra.mxu0 0.0
        %316 = vmatprep.mubr.f32.mxu0 0.0
        %317 = vmatmul.mubr.f32.gmra.mrb[0].mxu0 %v247
        %v318 = vpop.f32.mrb[0].mxu0
        %v319 = vadd.f32 %v243, %v318
        %v320 = vpop.f32.mrb[0].mxu0
        %321 = vdwg.mxu0
        %v322 = vmax.f32 %v319, 0.0
        %324 = vrot.lane.b32.xlu0 %v322, 1
        %v325 = vpop.permute.xlu0 %324
        %v327 = vsel %vm229, 0.0, %v325
        %328 = vrot.lane.b32.xlu0 %v322, 127
        %v329 = vpop.permute.xlu0 %328
        %v331 = vsel %vm234, %v329, 0.0
        %333 = vset.pattern.permute.xlu0 0
        %334 = vperm.xlu0 %333, %v223
        %v335 = vpop.permute.xlu0 %334
        %vm337 = vcmask 195584
        %v339 = vsel %vm337, %v222, 0
        %341 = vmatprep.subr.mxu0 0.0
        %342 = vmatpush1.msra.mxu0 %v327
        %343 = vmatprep.subr.mxu0 0.0
        %344 = vmatpush1.msra.mxu0 %v322
        %345 = vmatprep.subr.mxu0 0.0
        %346 = vmatpush1.msra.mxu0 %v331
        %347 = vmatprep.subr.mxu0 0.0
        %348 = vmatpush1.msra.mxu0 0.0
        %349 = vmatprep.subr.mxu0 0.0
        %350 = vmatpush1.msra.mxu0 0.0
        %351 = vmatprep.subr.mxu0 0.0
        %352 = vmatpush1.msra.mxu0 0.0
        %353 = vmatprep.subr.mxu0 0.0
        %354 = vmatpush1.msra.mxu0 0.0
        %355 = vmatprep.subr.mxu0 0.0
        %356 = vmatpush1.msra.mxu0 0.0
        %357 = vmatprep.subr.mxu0 0.0
        %358 = vmatpush1.msra.mxu0 0.0
        %359 = vmatprep.subr.mxu0 0.0
        %360 = vmatpush1.msra.mxu0 0.0
        %361 = vmatprep.subr.mxu0 0.0
        %362 = vmatpush1.msra.mxu0 0.0
        %363 = vmatprep.subr.mxu0 0.0
        %364 = vmatpush1.msra.mxu0 0.0
        %365 = vmatprep.subr.mxu0 0.0
        %366 = vmatpush1.msra.mxu0 0.0
        %367 = vmatprep.subr.mxu0 0.0
        %368 = vmatpush1.msra.mxu0 0.0
        %369 = vmatprep.subr.mxu0 0.0
        %370 = vmatpush1.msra.mxu0 0.0
        %371 = vmatprep.subr.mxu0 0.0
        %372 = vmatpush1.msra.mxu0 0.0
        %373 = vmatprep.subr.mxu0 0.0
        %374 = vmatpush1.msra.mxu0 0.0
        %375 = vmatprep.subr.mxu0 0.0
        %376 = vmatpush1.msra.mxu0 0.0
        %377 = vmatprep.subr.mxu0 0.0
        %378 = vmatpush1.msra.mxu0 0.0
        %379 = vmatprep.subr.mxu0 0.0
        %380 = vmatpush1.msra.mxu0 0.0
        %381 = vmatprep.subr.mxu0 0.0
        %382 = vmatpush1.msra.mxu0 0.0
        %383 = vmatprep.subr.mxu0 0.0
        %384 = vmatpush1.msra.mxu0 0.0
        %385 = vmatprep.subr.mxu0 0.0
        %386 = vmatpush1.msra.mxu0 0.0
        %387 = vmatprep.subr.mxu0 0.0
        %388 = vmatpush1.msra.mxu0 0.0
        %389 = vmatprep.subr.mxu0 0.0
        %390 = vmatpush1.msra.mxu0 0.0
        %391 = vmatprep.subr.mxu0 0.0
        %392 = vmatpush1.msra.mxu0 0.0
        %393 = vmatprep.subr.mxu0 0.0
        %394 = vmatpush1.msra.mxu0 0.0
        %395 = vmatprep.subr.mxu0 0.0
        %396 = vmatpush1.msra.mxu0 0.0
        %397 = vmatprep.subr.mxu0 0.0
        %398 = vmatpush1.msra.mxu0 0.0
        %399 = vmatprep.subr.mxu0 0.0
        %400 = vmatpush1.msra.mxu0 0.0
        %401 = vmatprep.subr.mxu0 0.0
        %402 = vmatpush1.msra.mxu0 0.0
        %403 = vmatprep.subr.mxu0 0.0
        %404 = vmatpush1.msra.mxu0 0.0
        %405 = vmatprep.mubr.f32.mxu0 0.0
        %406 = vmatmul.mubr.f32.gmra.mrb[0].mxu0 %v339
        %v407 = vpop.f32.mrb[0].mxu0
        %v408 = vadd.f32 %v335, %v407
        %v409 = vpop.f32.mrb[0].mxu0
        %410 = vdwg.mxu0
        %v411 = vmax.f32 %v408, 0.0
        %vm412 = vcmask 130048
        %413 = vst.msk [vmem:[%s215] sm:$0xff] %vm412, %v411
        %s414 = sand.u32 %s137, 1
        %s415 = scalar_lea.sflag [#allocation3], %s414
        %s416 = sand.u32 %s137, 1
        %s417 = smul.addr %s416, 8
        %s418 = scalar_lea.vmem [#allocation2], %s417
        // Predicated region
        $region41: #{tpu_custom_call.1} parent=39 // pred_check
          %p419 = pneg %p147
        $region42: #{tpu_custom_call.1} parent=39 // pred_check_branch
          %421 = sbr.rel (%p419) target = $region44
        $region43: #{tpu_custom_call.1} parent=39 // pred_region
          %s423 = ssub.s32 128, 128
          %424 = vsyncadd %s415, %s423
          %s425 = smul.addr %s19, 128
          %s426 = scalar_lea.hbm %s5, %s425
          %s428 = sshll.u32 %s418, 4
          %s429 = int_to_ptr.vmem [resolvable:$true] %s428
          %431 = dma.vmem_to_hbm [thread:$0]  %s429, 128, %s426, %s415
        $region44: #{tpu_custom_call.1} parent=39 // pred_fallthru
          _
      $region40: #{tpu_custom_call.1} parent=5 // pred_fallthru
        _
      %p432 = scmp.le.s32.totalorder 2, %s14
      // Predicated region
      $region45: #{tpu_custom_call.1} parent=5 // pred_check
        %p433 = pneg %p432
      $region46: #{tpu_custom_call.1} parent=5 // pred_check_branch
        %435 = sbr.rel (%p433) target = $region48
      $region47: #{tpu_custom_call.1} parent=5 // pred_region
        %s436 = ssub.s32 %s14, 2
        // Predicated region
        $region49: #{tpu_custom_call.1} parent=47 // pred_check
          %p437 = pneg %p153
        $region50: #{tpu_custom_call.1} parent=47 // pred_check_branch
          %439 = sbr.rel (%p437) target = $region52
        $region51: #{tpu_custom_call.1} parent=47 // pred_region
          %s440 = sand.u32 %s138, 1
          %s441 = scalar_lea.sflag [#allocation3], %s440
          %s442 = sand.u32 %s138, 1
          %s443 = smul.addr %s442, 8
          %s444 = scalar_lea.vmem [#allocation2], %s443
          %445 = dma.done %s441, 128
        $region52: #{tpu_custom_call.1} parent=47 // pred_fallthru
          _
      $region48: #{tpu_custom_call.1} parent=5 // pred_fallthru
        _
    $region6: #{tpu_custom_call.1} parent=1 // loop_footer
      %s18 = sadd.s32 1, %s14
    $region7: #{tpu_custom_call.1} parent=1 // loop_footer_branch
      %13 = sbr.rel target = $region3
    $region8: #{tpu_custom_call.1} parent=1 // loop_exit
      _
    %446 = vsyncpa [#allocation3], 1
    %s447 = scalar_lea.sflag [#allocation3], 1
    %448 = vsyncpa %s447, 1

</llo_original>
